<compile_context>
chip_gen: v7x
topology: tpu7x:2x2x1
jax: 0.10.0
libtpu: 0.0.40
codegen_flags: <defaults>
</compile_context>

<pallas_src>
import math

import jax
import jax.numpy as jnp
from jax.experimental import pallas as pl

# ---- static model hyper-parameters (small synthetic config) ----
B = 2                      # batch
T = 8                      # tokens
D = 32                     # model dim
H = 4                      # attention heads
DH = D // H                # head dim (8)
MLP_RATIO = 4.0
HID = int(D * MLP_RATIO)   # 128
EPS = 1e-5                 # nn.LayerNorm default
LANES = 128

assert D % H == 0 and 4 * D == LANES and 3 * D == 96 and HID == LANES and T == 8

# ---- packed parameter-slab row layout (lanes are the 128-wide axis) ----
R_WQKV = 0            # rows [0, 32):    lanes [0,96) = scaled [wq|wk|wv], lanes [96,128) = wo
R_W1   = D            # rows [32, 64):   w1 (D, HID)
R_W2   = 2 * D        # rows [64, 192):  lanes [0,32) = w2 (HID, D)
R_BQKV = 2 * D + HID  # row 192:         lanes [0,96) = scaled [bq|bk|bv], rest 0
R_BM1  = R_BQKV + 1   # row 193:         bm1 (HID,)
R_LN   = R_BQKV + 2   # row 194:         [g1 | be1 | g2 | be2]
R_B2   = R_BQKV + 3   # row 195:         [bo | bm2 | 0 | 0]
SLAB_ROWS = 200       # padded to a multiple of 8 sublanes


def _layernorm(x, gamma, beta):
    mu = jnp.mean(x, axis=-1, keepdims=True)
    var = jnp.mean((x - mu) ** 2, axis=-1, keepdims=True)
    return (x - mu) * jax.lax.rsqrt(var + EPS) * gamma + beta


def _erf(x):
    # Abramowitz & Stegun 7.1.26, |err| < 1.5e-7.  Uses only abs/mul/add/exp/
    # select, all of which lower on the VPU/EUP.  Keeps torch's exact GELU
    # semantics well inside the 1e-4 tolerance.
    a1, a2, a3, a4, a5 = (0.254829592, -0.284496736, 1.421413741,
                          -1.453152027, 1.061405429)
    pc = 0.3275911
    ax = jnp.abs(x)
    t = 1.0 / (1.0 + pc * ax)
    poly = ((((a5 * t + a4) * t + a3) * t + a2) * t + a1) * t
    y = 1.0 - poly * jnp.exp(-ax * ax)
    return jnp.where(x >= 0, y, -y)


def _gelu_exact(x):
    return 0.5 * x * (1.0 + _erf(x * (1.0 / math.sqrt(2.0))))


def vit_block_kernel(x_ref, w_ref, o_ref):
    f32 = jnp.float32
    x = x_ref[...]                                         # (B*T, D)

    # ---- unpack the parameter slab (static slices only; XLU-slot relayouts) ----
    g1   = w_ref[R_LN:R_LN + 1, 0:D]
    be1  = w_ref[R_LN:R_LN + 1, D:2 * D]
    g2   = w_ref[R_LN:R_LN + 1, 2 * D:3 * D]
    be2  = w_ref[R_LN:R_LN + 1, 3 * D:4 * D]
    bo   = w_ref[R_B2:R_B2 + 1, 0:D]
    bm2  = w_ref[R_B2:R_B2 + 1, D:2 * D]
    bm1  = w_ref[R_BM1:R_BM1 + 1, :]                       # (1, HID)
    bqkv = w_ref[R_BQKV:R_BQKV + 1, :]                     # (1, 128); lanes 96:128 == 0

    # ---------- norm1 + multi-head self-attention ----------
    y = _layernorm(x, g1, be1)                             # (B*T, D)

    # ONE full-width projection dot.  Lanes [0,96) = [q|k|v] (q pre-scaled by
    # 1/sqrt(DH) at pack time); lanes [96,128) hit the wo columns and are
    # simply ignored.  Replaces 12 narrow (32x8) per-head dots.
    proj = jnp.dot(y, w_ref[R_WQKV:R_WQKV + D, :],
                   preferred_element_type=f32) + bqkv      # (B*T, 128)

    # Stack heads along sublanes -> (H*B*T, DH); row = h*(B*T) + b*T + t.
    # Static 8-lane slices land on the otherwise-idle XLU slot.
    qs = jnp.concatenate([proj[:, h * DH:(h + 1) * DH] for h in range(H)], axis=0)
    ks = jnp.concatenate([proj[:, D + h * DH:D + (h + 1) * DH] for h in range(H)], axis=0)
    vs = jnp.concatenate([proj[:, 2 * D + h * DH:2 * D + (h + 1) * DH] for h in range(H)], axis=0)

    # ONE stacked scores matmul + block-diagonal mask + ONE softmax + ONE PV
    # matmul (replaces 2 * H * B tiny 8x8x8 batched matmuls).
    GT = H * B * T                                          # 64
    s = jax.lax.dot_general(qs, ks, (((1,), (1,)), ((), ())),
                            preferred_element_type=f32)     # (GT, GT)
    ri = jax.lax.broadcasted_iota(jnp.int32, (GT, GT), 0)
    ci = jax.lax.broadcasted_iota(jnp.int32, (GT, GT), 1)
    same = jnp.right_shift(ri, 3) == jnp.right_shift(ci, 3)  # same (h, b) block (T == 8)
    s = jnp.where(same, s, -1e30)                            # each row keeps T live entries
    s = s - jnp.max(s, axis=-1, keepdims=True)
    p = jnp.exp(s)                                           # masked entries underflow to 0
    denom = jnp.sum(p, axis=-1, keepdims=True)
    p = p * pl.reciprocal(denom, approx=False)               # EUP; approx=True if tol allows
    pv = jnp.dot(p, vs, preferred_element_type=f32)          # (GT, DH)

    # Un-stack heads back onto lanes and apply the output projection as ONE dot.
    pv_cat = jnp.concatenate(
        [pv[h * (B * T):(h + 1) * (B * T), :] for h in range(H)], axis=1)   # (B*T, D)
    attn = jnp.dot(pv_cat, w_ref[R_WQKV:R_WQKV + D, 3 * D:4 * D],
                   preferred_element_type=f32) + bo
    x1 = x + attn                                            # residual 1

    # ---------- norm2 + MLP (Linear -> exact GELU -> Linear) ----------
    y2 = _layernorm(x1, g2, be2)
    hdn = jnp.dot(y2, w_ref[R_W1:R_W1 + D, :], preferred_element_type=f32) + bm1   # (B*T, HID)
    hdn = _gelu_exact(hdn)
    mlp = jnp.dot(hdn, w_ref[R_W2:R_W2 + HID, 0:D], preferred_element_type=f32) + bm2
    o_ref[...] = x1 + mlp                                    # residual 2

    # TODO(synk): attn_mask / score_mod / rel_pos_emb / KV-cache args of the
    # reference forward are None/False in this synthetic setting and not modeled.


def pack_params(p):
    """Pack all weights/biases into ONE lane-dense (SLAB_ROWS, 128) f32 slab.

    Runs once, outside the kernel and off the per-call hot path.  The 1/sqrt(DH)
    attention scale is folded into wq / bq here.
    """
    scale = 1.0 / math.sqrt(DH)
    wqkv = p["wqkv"].at[:, 0:D].multiply(scale)       # (D, 3D), q columns scaled
    bqkv = p["bqkv"][0].at[0:D].multiply(scale)       # (3D,),   q bias scaled

    slab = jnp.zeros((SLAB_ROWS, LANES), jnp.float32)
    slab = slab.at[R_WQKV:R_WQKV + D, 0:3 * D].set(wqkv)
    slab = slab.at[R_WQKV:R_WQKV + D, 3 * D:4 * D].set(p["wo"])
    slab = slab.at[R_W1:R_W1 + D, :].set(p["w1"])
    slab = slab.at[R_W2:R_W2 + HID, 0:D].set(p["w2"])
    slab = slab.at[R_BQKV, 0:3 * D].set(bqkv)
    slab = slab.at[R_BM1, :].set(p["bm1"][0])
    slab = slab.at[R_LN, 0:D].set(p["g1"][0])
    slab = slab.at[R_LN, D:2 * D].set(p["be1"][0])
    slab = slab.at[R_LN, 2 * D:3 * D].set(p["g2"][0])
    slab = slab.at[R_LN, 3 * D:4 * D].set(p["be2"][0])
    slab = slab.at[R_B2, 0:D].set(p["bo"][0])
    slab = slab.at[R_B2, D:2 * D].set(p["bm2"][0])
    return slab


def vit_block(x, slab):
    """x: (B, T, D) float32; slab: packed parameters from pack_params."""
    # No grid: one kernel step on one TensorCore (2 input DMAs, 1 output DMA).
    # NOTE (v7x): explicit single-core choice for this toy size; scale up with
    # grid=(B,)/token tiles + dimension_semantics=("parallel",) for both cores.
    out2d = pl.pallas_call(
        vit_block_kernel,
        out_shape=jax.ShapeDtypeStruct((B * T, D), jnp.float32),
    )(x.reshape(B * T, D), slab)
    return out2d.reshape(B, T, D)


def _init_params(key):
    ks = jax.random.split(key, 6)
    s = 0.05
    return {
        # LayerNorm 1
        "g1":  jnp.ones((1, D), jnp.float32),
        "be1": jnp.zeros((1, D), jnp.float32),
        # Attention fused qkv / out proj (module layout, in->out)
        "wqkv": s * jax.random.normal(ks[0], (D, 3 * D), jnp.float32),
        "bqkv": s * jax.random.normal(ks[1], (1, 3 * D), jnp.float32),
        "wo":   s * jax.random.normal(ks[2], (D, D), jnp.float32),
        "bo":   jnp.zeros((1, D), jnp.float32),
        # LayerNorm 2
        "g2":  jnp.ones((1, D), jnp.float32),
        "be2": jnp.zeros((1, D), jnp.float32),
        # MLP
        "w1":  s * jax.random.normal(ks[3], (D, HID), jnp.float32),
        "bm1": s * jax.random.normal(ks[4], (1, HID), jnp.float32),
        "w2":  s * jax.random.normal(ks[5], (HID, D), jnp.float32),
        "bm2": jnp.zeros((1, D), jnp.float32),
    }


def _reference(x, p):
    """Pure-JAX reference of the ViTBlock forward (module layout, for verification)."""
    y = _layernorm(x, p["g1"][0], p["be1"][0])
    qkv = y @ p["wqkv"] + p["bqkv"][0]                         # (B, T, 3D)
    q, k, v = jnp.split(qkv, 3, axis=-1)

    def split_heads(t):
        return t.reshape(B, T, H, DH).transpose(0, 2, 1, 3)    # (B, H, T, DH)

    q, k, v = split_heads(q), split_heads(k), split_heads(v)
    s = jnp.einsum("bhqd,bhkd->bhqk", q, k) / math.sqrt(DH)
    p_attn = jax.nn.softmax(s, axis=-1)
    o = jnp.einsum("bhqk,bhkd->bhqd", p_attn, v)
    o = o.transpose(0, 2, 1, 3).reshape(B, T, D)
    x1 = x + (o @ p["wo"] + p["bo"][0])
    y2 = _layernorm(x1, p["g2"][0], p["be2"][0])
    h = jax.nn.gelu(y2 @ p["w1"] + p["bm1"][0], approximate=False)
    return x1 + (h @ p["w2"] + p["bm2"][0])


if __name__ == "__main__":
    key = jax.random.PRNGKey(0)
    kx, kp = jax.random.split(key)
    x = jax.random.normal(kx, (B, T, D), jnp.float32)
    params = _init_params(kp)

    slab = jax.block_until_ready(pack_params(params))   # packed once, off the hot path

    out = vit_block(x, slab)
    out = jax.block_until_ready(out)

    ref = _reference(x, params)
    assert out.shape == (B, T, D)
    err = float(jnp.max(jnp.abs(out - ref)))
    assert jnp.allclose(out, ref, atol=1e-4, rtol=1e-4), f"max abs err {err}"
    print("KERNEL_OK")
</pallas_src>

<mosaic_0001>
module attributes {stable_mosaic.version = 11 : i64} {
  func.func @vit_block_kernel(%arg0: memref<16x32xf32, #tpu.memory_space<vmem>>, %arg1: memref<200x128xf32, #tpu.memory_space<vmem>>, %arg2: memref<16x32xf32, #tpu.memory_space<vmem>>) attributes {dimension_semantics = [], scalar_prefetch = 0 : i64, scratch_operands = 0 : i64, tpu.core_type = #tpu.core_type<tc>} {
    %c0 = arith.constant 0 : index
    %c0_0 = arith.constant 0 : index
    %0 = vector.load %arg0[%c0, %c0_0] : memref<16x32xf32, #tpu.memory_space<vmem>>, vector<16x32xf32>
    %c194 = arith.constant 194 : index
    %c0_1 = arith.constant 0 : index
    %1 = vector.load %arg1[%c194, %c0_1] : memref<200x128xf32, #tpu.memory_space<vmem>>, vector<1x32xf32>
    %c194_2 = arith.constant 194 : index
    %c32 = arith.constant 32 : index
    %2 = vector.load %arg1[%c194_2, %c32] : memref<200x128xf32, #tpu.memory_space<vmem>>, vector<1x32xf32>
    %c194_3 = arith.constant 194 : index
    %c64 = arith.constant 64 : index
    %3 = vector.load %arg1[%c194_3, %c64] : memref<200x128xf32, #tpu.memory_space<vmem>>, vector<1x32xf32>
    %c194_4 = arith.constant 194 : index
    %c96 = arith.constant 96 : index
    %4 = vector.load %arg1[%c194_4, %c96] : memref<200x128xf32, #tpu.memory_space<vmem>>, vector<1x32xf32>
    %c195 = arith.constant 195 : index
    %c0_5 = arith.constant 0 : index
    %5 = vector.load %arg1[%c195, %c0_5] : memref<200x128xf32, #tpu.memory_space<vmem>>, vector<1x32xf32>
    %c195_6 = arith.constant 195 : index
    %c32_7 = arith.constant 32 : index
    %6 = vector.load %arg1[%c195_6, %c32_7] : memref<200x128xf32, #tpu.memory_space<vmem>>, vector<1x32xf32>
    %c193 = arith.constant 193 : index
    %c0_8 = arith.constant 0 : index
    %7 = vector.load %arg1[%c193, %c0_8] : memref<200x128xf32, #tpu.memory_space<vmem>>, vector<1x128xf32>
    %c192 = arith.constant 192 : index
    %c0_9 = arith.constant 0 : index
    %8 = vector.load %arg1[%c192, %c0_9] : memref<200x128xf32, #tpu.memory_space<vmem>>, vector<1x128xf32>
    %cst = arith.constant dense<0.000000e+00> : vector<16xf32>
    %9 = vector.multi_reduction <add>, %0, %cst [1] : vector<16x32xf32> to vector<16xf32>
    %10 = vector.shape_cast %9 : vector<16xf32> to vector<16x1xf32>
    %cst_10 = arith.constant 3.200000e+01 : f32
    %11 = vector.broadcast %cst_10 : f32 to vector<16x1xf32>
    %12 = arith.divf %10, %11 : vector<16x1xf32>
    %13 = vector.broadcast %12 : vector<16x1xf32> to vector<16x32xf32>
    %14 = arith.subf %0, %13 : vector<16x32xf32>
    %15 = arith.mulf %14, %14 : vector<16x32xf32>
    %cst_11 = arith.constant dense<0.000000e+00> : vector<16xf32>
    %16 = vector.multi_reduction <add>, %15, %cst_11 [1] : vector<16x32xf32> to vector<16xf32>
    %17 = vector.shape_cast %16 : vector<16xf32> to vector<16x1xf32>
    %cst_12 = arith.constant 3.200000e+01 : f32
    %18 = vector.broadcast %cst_12 : f32 to vector<16x1xf32>
    %19 = arith.divf %17, %18 : vector<16x1xf32>
    %20 = vector.broadcast %12 : vector<16x1xf32> to vector<16x32xf32>
    %21 = arith.subf %0, %20 : vector<16x32xf32>
    %cst_13 = arith.constant 9.99999974E-6 : f32
    %22 = vector.broadcast %cst_13 : f32 to vector<16x1xf32>
    %23 = arith.addf %19, %22 : vector<16x1xf32>
    %24 = math.rsqrt %23 : vector<16x1xf32>
    %25 = vector.broadcast %24 : vector<16x1xf32> to vector<16x32xf32>
    %26 = arith.mulf %21, %25 : vector<16x32xf32>
    %27 = vector.broadcast %1 : vector<1x32xf32> to vector<16x32xf32>
    %28 = arith.mulf %26, %27 : vector<16x32xf32>
    %29 = vector.broadcast %2 : vector<1x32xf32> to vector<16x32xf32>
    %30 = arith.addf %28, %29 : vector<16x32xf32>
    %c0_14 = arith.constant 0 : index
    %c0_15 = arith.constant 0 : index
    %31 = vector.load %arg1[%c0_14, %c0_15] : memref<200x128xf32, #tpu.memory_space<vmem>>, vector<32x128xf32>
    %cst_16 = arith.constant dense<0.000000e+00> : vector<16x128xf32>
    %32 = tpu.matmul %30, %31, %cst_16 {dimension_numbers = #tpu.dot_dimension_numbers<[1], [0], [0], [1], [0, 0, 1, 1], [], []>} : vector<16x32xf32>, vector<32x128xf32>, vector<16x128xf32> -> vector<16x128xf32>
    %33 = vector.broadcast %8 : vector<1x128xf32> to vector<16x128xf32>
    %34 = arith.addf %32, %33 : vector<16x128xf32>
    %35 = vector.extract_strided_slice %34 {offsets = [0, 0], sizes = [16, 8], strides = [1, 1]} : vector<16x128xf32> to vector<16x8xf32>
    %36 = vector.extract_strided_slice %34 {offsets = [0, 8], sizes = [16, 8], strides = [1, 1]} : vector<16x128xf32> to vector<16x8xf32>
    %37 = vector.extract_strided_slice %34 {offsets = [0, 16], sizes = [16, 8], strides = [1, 1]} : vector<16x128xf32> to vector<16x8xf32>
    %38 = vector.extract_strided_slice %34 {offsets = [0, 24], sizes = [16, 8], strides = [1, 1]} : vector<16x128xf32> to vector<16x8xf32>
    %39 = tpu.concatenate %35, %36, %37, %38 in 0 : vector<16x8xf32>, vector<16x8xf32>, vector<16x8xf32>, vector<16x8xf32> -> vector<64x8xf32>
    %40 = vector.extract_strided_slice %34 {offsets = [0, 32], sizes = [16, 8], strides = [1, 1]} : vector<16x128xf32> to vector<16x8xf32>
    %41 = vector.extract_strided_slice %34 {offsets = [0, 40], sizes = [16, 8], strides = [1, 1]} : vector<16x128xf32> to vector<16x8xf32>
    %42 = vector.extract_strided_slice %34 {offsets = [0, 48], sizes = [16, 8], strides = [1, 1]} : vector<16x128xf32> to vector<16x8xf32>
    %43 = vector.extract_strided_slice %34 {offsets = [0, 56], sizes = [16, 8], strides = [1, 1]} : vector<16x128xf32> to vector<16x8xf32>
    %44 = tpu.concatenate %40, %41, %42, %43 in 0 : vector<16x8xf32>, vector<16x8xf32>, vector<16x8xf32>, vector<16x8xf32> -> vector<64x8xf32>
    %45 = vector.extract_strided_slice %34 {offsets = [0, 64], sizes = [16, 8], strides = [1, 1]} : vector<16x128xf32> to vector<16x8xf32>
    %46 = vector.extract_strided_slice %34 {offsets = [0, 72], sizes = [16, 8], strides = [1, 1]} : vector<16x128xf32> to vector<16x8xf32>
    %47 = vector.extract_strided_slice %34 {offsets = [0, 80], sizes = [16, 8], strides = [1, 1]} : vector<16x128xf32> to vector<16x8xf32>
    %48 = vector.extract_strided_slice %34 {offsets = [0, 88], sizes = [16, 8], strides = [1, 1]} : vector<16x128xf32> to vector<16x8xf32>
    %49 = tpu.concatenate %45, %46, %47, %48 in 0 : vector<16x8xf32>, vector<16x8xf32>, vector<16x8xf32>, vector<16x8xf32> -> vector<64x8xf32>
    %cst_17 = arith.constant dense<0.000000e+00> : vector<64x64xf32>
    %50 = tpu.matmul %39, %44, %cst_17 {dimension_numbers = #tpu.dot_dimension_numbers<[1], [1], [0], [0], [0, 0, 1, 0], [], []>} : vector<64x8xf32>, vector<64x8xf32>, vector<64x64xf32> -> vector<64x64xf32>
    %51 = tpu.iota {dimensions = array<i32: 0>} : vector<64x64xi32>
    %52 = tpu.iota {dimensions = array<i32: 1>} : vector<64x64xi32>
    %c3_i32 = arith.constant 3 : i32
    %53 = vector.broadcast %c3_i32 : i32 to vector<64x64xi32>
    %54 = arith.shrsi %51, %53 : vector<64x64xi32>
    %c3_i32_18 = arith.constant 3 : i32
    %55 = vector.broadcast %c3_i32_18 : i32 to vector<64x64xi32>
    %56 = arith.shrsi %52, %55 : vector<64x64xi32>
    %57 = arith.cmpi eq, %54, %56 : vector<64x64xi32>
    %cst_19 = arith.constant -1.000000e+30 : f32
    %58 = vector.broadcast %cst_19 : f32 to vector<64x64xf32>
    %59 = arith.select %57, %50, %58 : vector<64x64xi1>, vector<64x64xf32>
    %cst_20 = arith.constant dense<0xFF800000> : vector<64xf32>
    %60 = vector.multi_reduction <maximumf>, %59, %cst_20 [1] : vector<64x64xf32> to vector<64xf32>
    %61 = vector.shape_cast %60 : vector<64xf32> to vector<64x1xf32>
    %62 = vector.broadcast %61 : vector<64x1xf32> to vector<64x64xf32>
    %63 = arith.subf %59, %62 : vector<64x64xf32>
    %64 = math.exp %63 : vector<64x64xf32>
    %cst_21 = arith.constant dense<0.000000e+00> : vector<64xf32>
    %65 = vector.multi_reduction <add>, %64, %cst_21 [1] : vector<64x64xf32> to vector<64xf32>
    %66 = vector.shape_cast %65 : vector<64xf32> to vector<64x1xf32>
    %67 = tpu.reciprocal %66 : vector<64x1xf32> -> vector<64x1xf32>
    %68 = vector.broadcast %67 : vector<64x1xf32> to vector<64x64xf32>
    %69 = arith.mulf %64, %68 : vector<64x64xf32>
    %cst_22 = arith.constant dense<0.000000e+00> : vector<64x8xf32>
    %70 = tpu.matmul %69, %49, %cst_22 {dimension_numbers = #tpu.dot_dimension_numbers<[1], [0], [0], [1], [0, 0, 1, 1], [], []>} : vector<64x64xf32>, vector<64x8xf32>, vector<64x8xf32> -> vector<64x8xf32>
    %71 = vector.extract_strided_slice %70 {offsets = [0, 0], sizes = [16, 8], strides = [1, 1]} : vector<64x8xf32> to vector<16x8xf32>
    %72 = vector.extract_strided_slice %70 {offsets = [16, 0], sizes = [16, 8], strides = [1, 1]} : vector<64x8xf32> to vector<16x8xf32>
    %73 = vector.extract_strided_slice %70 {offsets = [32, 0], sizes = [16, 8], strides = [1, 1]} : vector<64x8xf32> to vector<16x8xf32>
    %74 = vector.extract_strided_slice %70 {offsets = [48, 0], sizes = [16, 8], strides = [1, 1]} : vector<64x8xf32> to vector<16x8xf32>
    %75 = tpu.concatenate %71, %72, %73, %74 in 1 : vector<16x8xf32>, vector<16x8xf32>, vector<16x8xf32>, vector<16x8xf32> -> vector<16x32xf32>
    %c0_23 = arith.constant 0 : index
    %c96_24 = arith.constant 96 : index
    %76 = vector.load %arg1[%c0_23, %c96_24] : memref<200x128xf32, #tpu.memory_space<vmem>>, vector<32x32xf32>
    %cst_25 = arith.constant dense<0.000000e+00> : vector<16x32xf32>
    %77 = tpu.matmul %75, %76, %cst_25 {dimension_numbers = #tpu.dot_dimension_numbers<[1], [0], [0], [1], [0, 0, 1, 1], [], []>} : vector<16x32xf32>, vector<32x32xf32>, vector<16x32xf32> -> vector<16x32xf32>
    %78 = vector.broadcast %5 : vector<1x32xf32> to vector<16x32xf32>
    %79 = arith.addf %77, %78 : vector<16x32xf32>
    %80 = arith.addf %0, %79 : vector<16x32xf32>
    %cst_26 = arith.constant dense<0.000000e+00> : vector<16xf32>
    %81 = vector.multi_reduction <add>, %80, %cst_26 [1] : vector<16x32xf32> to vector<16xf32>
    %82 = vector.shape_cast %81 : vector<16xf32> to vector<16x1xf32>
    %cst_27 = arith.constant 3.200000e+01 : f32
    %83 = vector.broadcast %cst_27 : f32 to vector<16x1xf32>
    %84 = arith.divf %82, %83 : vector<16x1xf32>
    %85 = vector.broadcast %84 : vector<16x1xf32> to vector<16x32xf32>
    %86 = arith.subf %80, %85 : vector<16x32xf32>
    %87 = arith.mulf %86, %86 : vector<16x32xf32>
    %cst_28 = arith.constant dense<0.000000e+00> : vector<16xf32>
    %88 = vector.multi_reduction <add>, %87, %cst_28 [1] : vector<16x32xf32> to vector<16xf32>
    %89 = vector.shape_cast %88 : vector<16xf32> to vector<16x1xf32>
    %cst_29 = arith.constant 3.200000e+01 : f32
    %90 = vector.broadcast %cst_29 : f32 to vector<16x1xf32>
    %91 = arith.divf %89, %90 : vector<16x1xf32>
    %92 = vector.broadcast %84 : vector<16x1xf32> to vector<16x32xf32>
    %93 = arith.subf %80, %92 : vector<16x32xf32>
    %cst_30 = arith.constant 9.99999974E-6 : f32
    %94 = vector.broadcast %cst_30 : f32 to vector<16x1xf32>
    %95 = arith.addf %91, %94 : vector<16x1xf32>
    %96 = math.rsqrt %95 : vector<16x1xf32>
    %97 = vector.broadcast %96 : vector<16x1xf32> to vector<16x32xf32>
    %98 = arith.mulf %93, %97 : vector<16x32xf32>
    %99 = vector.broadcast %3 : vector<1x32xf32> to vector<16x32xf32>
    %100 = arith.mulf %98, %99 : vector<16x32xf32>
    %101 = vector.broadcast %4 : vector<1x32xf32> to vector<16x32xf32>
    %102 = arith.addf %100, %101 : vector<16x32xf32>
    %c32_31 = arith.constant 32 : index
    %c0_32 = arith.constant 0 : index
    %103 = vector.load %arg1[%c32_31, %c0_32] : memref<200x128xf32, #tpu.memory_space<vmem>>, vector<32x128xf32>
    %cst_33 = arith.constant dense<0.000000e+00> : vector<16x128xf32>
    %104 = tpu.matmul %102, %103, %cst_33 {dimension_numbers = #tpu.dot_dimension_numbers<[1], [0], [0], [1], [0, 0, 1, 1], [], []>} : vector<16x32xf32>, vector<32x128xf32>, vector<16x128xf32> -> vector<16x128xf32>
    %105 = vector.broadcast %7 : vector<1x128xf32> to vector<16x128xf32>
    %106 = arith.addf %104, %105 : vector<16x128xf32>
    %cst_34 = arith.constant 5.000000e-01 : f32
    %107 = vector.broadcast %cst_34 : f32 to vector<16x128xf32>
    %108 = arith.mulf %107, %106 : vector<16x128xf32>
    %cst_35 = arith.constant 0.707106769 : f32
    %109 = vector.broadcast %cst_35 : f32 to vector<16x128xf32>
    %110 = arith.mulf %106, %109 : vector<16x128xf32>
    %111 = math.absf %110 : vector<16x128xf32>
    %cst_36 = arith.constant 0.327591091 : f32
    %112 = vector.broadcast %cst_36 : f32 to vector<16x128xf32>
    %113 = arith.mulf %112, %111 : vector<16x128xf32>
    %cst_37 = arith.constant 1.000000e+00 : f32
    %114 = vector.broadcast %cst_37 : f32 to vector<16x128xf32>
    %115 = arith.addf %114, %113 : vector<16x128xf32>
    %cst_38 = arith.constant 1.000000e+00 : f32
    %116 = vector.broadcast %cst_38 : f32 to vector<16x128xf32>
    %117 = arith.divf %116, %115 : vector<16x128xf32>
    %cst_39 = arith.constant 1.06140542 : f32
    %118 = vector.broadcast %cst_39 : f32 to vector<16x128xf32>
    %119 = arith.mulf %118, %117 : vector<16x128xf32>
    %cst_40 = arith.constant -1.45315206 : f32
    %120 = vector.broadcast %cst_40 : f32 to vector<16x128xf32>
    %121 = arith.addf %119, %120 : vector<16x128xf32>
    %122 = arith.mulf %121, %117 : vector<16x128xf32>
    %cst_41 = arith.constant 1.42141378 : f32
    %123 = vector.broadcast %cst_41 : f32 to vector<16x128xf32>
    %124 = arith.addf %122, %123 : vector<16x128xf32>
    %125 = arith.mulf %124, %117 : vector<16x128xf32>
    %cst_42 = arith.constant -0.284496725 : f32
    %126 = vector.broadcast %cst_42 : f32 to vector<16x128xf32>
    %127 = arith.addf %125, %126 : vector<16x128xf32>
    %128 = arith.mulf %127, %117 : vector<16x128xf32>
    %cst_43 = arith.constant 0.254829586 : f32
    %129 = vector.broadcast %cst_43 : f32 to vector<16x128xf32>
    %130 = arith.addf %128, %129 : vector<16x128xf32>
    %131 = arith.mulf %130, %117 : vector<16x128xf32>
    %cst_44 = arith.constant 0.000000e+00 : f32
    %132 = vector.broadcast %cst_44 : f32 to vector<16x128xf32>
    %133 = arith.subf %132, %111 : vector<16x128xf32>
    %134 = arith.mulf %133, %111 : vector<16x128xf32>
    %135 = math.exp %134 : vector<16x128xf32>
    %136 = arith.mulf %131, %135 : vector<16x128xf32>
    %cst_45 = arith.constant 1.000000e+00 : f32
    %137 = vector.broadcast %cst_45 : f32 to vector<16x128xf32>
    %138 = arith.subf %137, %136 : vector<16x128xf32>
    %cst_46 = arith.constant 0.000000e+00 : f32
    %139 = vector.broadcast %cst_46 : f32 to vector<16x128xf32>
    %140 = arith.cmpf oge, %110, %139 : vector<16x128xf32>
    %cst_47 = arith.constant 0.000000e+00 : f32
    %141 = vector.broadcast %cst_47 : f32 to vector<16x128xf32>
    %142 = arith.subf %141, %138 : vector<16x128xf32>
    %143 = arith.select %140, %138, %142 : vector<16x128xi1>, vector<16x128xf32>
    %cst_48 = arith.constant 1.000000e+00 : f32
    %144 = vector.broadcast %cst_48 : f32 to vector<16x128xf32>
    %145 = arith.addf %144, %143 : vector<16x128xf32>
    %146 = arith.mulf %108, %145 : vector<16x128xf32>
    %c64_49 = arith.constant 64 : index
    %c0_50 = arith.constant 0 : index
    %147 = vector.load %arg1[%c64_49, %c0_50] : memref<200x128xf32, #tpu.memory_space<vmem>>, vector<128x32xf32>
    %cst_51 = arith.constant dense<0.000000e+00> : vector<16x32xf32>
    %148 = tpu.matmul %146, %147, %cst_51 {dimension_numbers = #tpu.dot_dimension_numbers<[1], [0], [0], [1], [0, 0, 1, 1], [], []>} : vector<16x128xf32>, vector<128x32xf32>, vector<16x32xf32> -> vector<16x32xf32>
    %149 = vector.broadcast %6 : vector<1x32xf32> to vector<16x32xf32>
    %150 = arith.addf %148, %149 : vector<16x32xf32>
    %151 = arith.addf %80, %150 : vector<16x32xf32>
    %c0_52 = arith.constant 0 : index
    %c0_53 = arith.constant 0 : index
    %152 = vector.load %arg2[%c0_52, %c0_53] : memref<16x32xf32, #tpu.memory_space<vmem>>, vector<16x32xf32>
    tpu.vector_store %arg2[%c0_52, %c0_53], %151 {strides = array<i32>} : memref<16x32xf32, #tpu.memory_space<vmem>>, vector<16x32xf32>,
    return
  }
}

</mosaic_0001>

<llo_original>
// kernel: tpu_custom_call.1
$region0: #{tpu_custom_call.1}
  #allocation0 [shape = 'u32[]', space=smem, size = 0x4, offset = 0x4, fixed_abs, tag = 'smem constant byte address 0x4 - core index']
  #allocation1 [shape = 'u32[144,128]{1,0:T(1,128)}', space=vmem, size = 0x12000, scoped, tag = 'internal scratch']
  %s0 = inlined_call_operand.hbm [shape: f32[16,32], index: 0, kind: input, shape index: {}]
  %s1 = inlined_call_operand.hbm [shape: f32[200,128], index: 1, kind: input, shape index: {}]
  %s2 = inlined_call_operand.hbm [shape: f32[16,32], index: 2, kind: output, shape index: {}]
  %s3 = sld [smem:[#allocation0]]
  $region26: #{tpu_custom_call.1} parent=0
    _
  %s5 = ssub.s32 1, %s3
  %s6 = scalar_select 0, %s5, %s3
  $region1: #{tpu_custom_call.1} parent=0
    #allocation2 [shape = 'u8[8192]{0}', space=vmem, size = 0x2000, scoped, tag = 'input window, operand 0, single buffered']
    #allocation3 [shape = 's32[1]{0}', space=sflag, size = 0x4, scoped, tag = 'scoped memory for tpu_custom_call.1']
    #allocation4 [shape = 's32[1]{0}', space=sflag, size = 0x4, scoped, tag = 'scoped memory for tpu_custom_call.1']
    #allocation5 [shape = 'u8[102400]{0}', space=vmem, size = 0x19000, scoped, tag = 'input window, operand 1, single buffered']
    #allocation6 [shape = 's32[1]{0}', space=sflag, size = 0x4, scoped, tag = 'scoped memory for tpu_custom_call.1']
    #allocation7 [shape = 'u8[8192]{0}', space=vmem, size = 0x2000, scoped, tag = 'output window, operand 0, single buffered']
    %7 = vsyncpa [#allocation3], 0
    %8 = vsyncpa [#allocation6], 0
    %9 = vsyncpa [#allocation4], 0
    // Predicated region
    $region2: #{tpu_custom_call.1} parent=1 // pred_check
      _
    $region3: #{tpu_custom_call.1} parent=1 // pred_check_branch
      %11 = sbr.rel (0) target = $region5
    $region4: #{tpu_custom_call.1} parent=1 // pred_region
      %s13 = ssub.s32 256, 256
      %14 = vsyncadd [#allocation3], %s13
      %s15 = sshll.u32 [#allocation2], 4
      %s16 = int_to_ptr.vmem [resolvable:$true] %s15
      %21 = dma.hbm_to_vmem [thread:$0]  %s0, 256, %s16, [#allocation3], 128, 128, 8
    $region5: #{tpu_custom_call.1} parent=1 // pred_fallthru
      _
    // Predicated region
    $region6: #{tpu_custom_call.1} parent=1 // pred_check
      _
    $region7: #{tpu_custom_call.1} parent=1 // pred_check_branch
      %23 = sbr.rel (0) target = $region9
    $region8: #{tpu_custom_call.1} parent=1 // pred_region
      %s25 = ssub.s32 3200, 3200
      %26 = vsyncadd [#allocation6], %s25
      %s27 = sshll.u32 [#allocation5], 4
      %s28 = int_to_ptr.vmem [resolvable:$true] %s27
      %33 = dma.hbm_to_vmem [thread:$0]  %s1, 3200, %s28, [#allocation6], 128, 128, 8
    $region9: #{tpu_custom_call.1} parent=1 // pred_fallthru
      _
    // Predicated region
    $region10: #{tpu_custom_call.1} parent=1 // pred_check
      _
    $region11: #{tpu_custom_call.1} parent=1 // pred_check_branch
      %35 = sbr.rel (0) target = $region13
    $region12: #{tpu_custom_call.1} parent=1 // pred_region
      %36 = dma.done [#allocation3], 256
    $region13: #{tpu_custom_call.1} parent=1 // pred_fallthru
      _
    // Predicated region
    $region14: #{tpu_custom_call.1} parent=1 // pred_check
      _
    $region15: #{tpu_custom_call.1} parent=1 // pred_check_branch
      %38 = sbr.rel (0) target = $region17
    $region16: #{tpu_custom_call.1} parent=1 // pred_region
      %39 = dma.done [#allocation6], 3200
    $region17: #{tpu_custom_call.1} parent=1 // pred_fallthru
      _
    %v40 = vld [vmem:[#allocation2] sm:$0xff]
    %v41 = vld [vmem:[#allocation2 + $0x8] sm:$0xff]
    %v42 = vld [vmem:[#allocation5 + $0xc2] sm:$0x1]
    %v43 = vld [vmem:[#allocation5 + $0xc3] sm:$0x1]
    %v44 = vld [vmem:[#allocation5 + $0xc1] sm:$0x1]
    %v45 = vld [vmem:[#allocation5 + $0xc0] sm:$0x1]
    %vm46 = vcmask 261120
    %v47 = vsel %vm46, %v40, 0.0
    %48 = vadd.xlane.f32.xlu0 %v47
    %v49 = vpop.xlane.xlu0 %48
    %v50 = vsel %vm46, %v41, 0.0
    %51 = vadd.xlane.f32.xlu0 %v50
    %v52 = vpop.xlane.xlu0 %51
    %v53 = vrcp.pop 32.0
    %v54 = vmul.f32 %v49, %v53
    %v55 = vmul.f32 %v52, %v53
    %v56 = vsub.f32 %v40, %v54
    %v57 = vsub.f32 %v41, %v55
    %v58 = vmul.f32 %v56, %v56
    %v59 = vmul.f32 %v57, %v57
    %v60 = vsel %vm46, %v58, 0.0
    %61 = vadd.xlane.f32.xlu0 %v60
    %v62 = vpop.xlane.xlu0 %61
    %v63 = vsel %vm46, %v59, 0.0
    %64 = vadd.xlane.f32.xlu0 %v63
    %v65 = vpop.xlane.xlu0 %64
    %v66 = vmul.f32 %v62, %v53
    %v67 = vmul.f32 %v65, %v53
    %v68 = vadd.f32 %v66, 1e-05
    %v69 = vadd.f32 %v67, 1e-05
    %v70 = vrsqrt.pop %v68
    %v71 = vrsqrt.pop %v69
    %v72 = vmul.f32 %v56, %v70
    %v73 = vmul.f32 %v57, %v71
    %v74 = vlaneseq
    %v75 = vshrl.u32 %v74, 7
    %v76 = vsub.s32 0, %v75
    %v77 = vrot.slane %v42, %v76
    %v78 = vmul.f32 %v72, %v77
    %v79 = vmul.f32 %v73, %v77
    %81 = vrot.lane.b32.xlu0 %v77, 96
    %v82 = vpop.permute.xlu0 %81
    %v84 = vadd.f32 %v78, %v82
    %v85 = vadd.f32 %v79, %v82
    %v86 = vld [vmem:[#allocation5] sm:$0xff]
    %v87 = vld [vmem:[#allocation5 + $0x8] sm:$0xff]
    %v88 = vld [vmem:[#allocation5 + $0x10] sm:$0xff]
    %v89 = vld [vmem:[#allocation5 + $0x18] sm:$0xff]
    %v90 = vlaneseq
    %v91 = vshrl.u32 %v90, 7
    %v92 = vsub.s32 0, %v91
    %v93 = vrot.slane %v45, %v92
    %v95 = vsel %vm46, %v84, 0
    %v98 = vsel %vm46, %v85, 0
    %100 = vmatprep.subr.mxu0 0.0
    %101 = vmatpush1.msra.mxu0 %v86
    %102 = vmatprep.subr.mxu0 0.0
    %103 = vmatpush1.msra.mxu0 %v87
    %104 = vmatprep.subr.mxu0 0.0
    %105 = vmatpush1.msra.mxu0 %v88
    %106 = vmatprep.subr.mxu0 0.0
    %107 = vmatpush1.msra.mxu0 %v89
    %108 = vmatprep.subr.mxu0 0.0
    %109 = vmatpush1.msra.mxu0 0.0
    %110 = vmatprep.subr.mxu0 0.0
    %111 = vmatpush1.msra.mxu0 0.0
    %112 = vmatprep.subr.mxu0 0.0
    %113 = vmatpush1.msra.mxu0 0.0
    %114 = vmatprep.subr.mxu0 0.0
    %115 = vmatpush1.msra.mxu0 0.0
    %116 = vmatprep.subr.mxu0 0.0
    %117 = vmatpush1.msra.mxu0 0.0
    %118 = vmatprep.subr.mxu0 0.0
    %119 = vmatpush1.msra.mxu0 0.0
    %120 = vmatprep.subr.mxu0 0.0
    %121 = vmatpush1.msra.mxu0 0.0
    %122 = vmatprep.subr.mxu0 0.0
    %123 = vmatpush1.msra.mxu0 0.0
    %124 = vmatprep.subr.mxu0 0.0
    %125 = vmatpush1.msra.mxu0 0.0
    %126 = vmatprep.subr.mxu0 0.0
    %127 = vmatpush1.msra.mxu0 0.0
    %128 = vmatprep.subr.mxu0 0.0
    %129 = vmatpush1.msra.mxu0 0.0
    %130 = vmatprep.subr.mxu0 0.0
    %131 = vmatpush1.msra.mxu0 0.0
    %132 = vmatprep.subr.mxu0 0.0
    %133 = vmatpush1.msra.mxu0 0.0
    %134 = vmatprep.subr.mxu0 0.0
    %135 = vmatpush1.msra.mxu0 0.0
    %136 = vmatprep.subr.mxu0 0.0
    %137 = vmatpush1.msra.mxu0 0.0
    %138 = vmatprep.subr.mxu0 0.0
    %139 = vmatpush1.msra.mxu0 0.0
    %140 = vmatprep.subr.mxu0 0.0
    %141 = vmatpush1.msra.mxu0 0.0
    %142 = vmatprep.subr.mxu0 0.0
    %143 = vmatpush1.msra.mxu0 0.0
    %144 = vmatprep.subr.mxu0 0.0
    %145 = vmatpush1.msra.mxu0 0.0
    %146 = vmatprep.subr.mxu0 0.0
    %147 = vmatpush1.msra.mxu0 0.0
    %148 = vmatprep.subr.mxu0 0.0
    %149 = vmatpush1.msra.mxu0 0.0
    %150 = vmatprep.subr.mxu0 0.0
    %151 = vmatpush1.msra.mxu0 0.0
    %152 = vmatprep.subr.mxu0 0.0
    %153 = vmatpush1.msra.mxu0 0.0
    %154 = vmatprep.subr.mxu0 0.0
    %155 = vmatpush1.msra.mxu0 0.0
    %156 = vmatprep.subr.mxu0 0.0
    %157 = vmatpush1.msra.mxu0 0.0
    %158 = vmatprep.subr.mxu0 0.0
    %159 = vmatpush1.msra.mxu0 0.0
    %160 = vmatprep.subr.mxu0 0.0
    %161 = vmatpush1.msra.mxu0 0.0
    %162 = vmatprep.subr.mxu0 0.0
    %163 = vmatpush1.msra.mxu0 0.0
    %164 = vmatprep.mubr.f32.mxu0 0.0
    %165 = vmatmul.mubr.f32.gmra.mrb[0].mxu0 %v95
    %v166 = vpop.f32.mrb[0].mxu0
    %v167 = vadd.f32 %v93, %v166
    %v168 = vpop.f32.mrb[0].mxu0
    %169 = vmatprep.mubr.f32.mxu0 0.0
    %170 = vmatmul.mubr.f32.gmra.mrb[0].mxu0 %v98
    %v171 = vpop.f32.mrb[0].mxu0
    %v172 = vadd.f32 %v93, %v171
    %v173 = vpop.f32.mrb[0].mxu0
    %174 = vdwg.mxu0
    %177 = vrot.lane.b32.xlu0 %v167, 120
    %v178 = vpop.permute.xlu0 %177
    %179 = vrot.lane.b32.xlu0 %v172, 120
    %v180 = vpop.permute.xlu0 %179
    %181 = vrot.lane.b32.xlu0 %v167, 112
    %v182 = vpop.permute.xlu0 %181
    %183 = vrot.lane.b32.xlu0 %v172, 112
    %v184 = vpop.permute.xlu0 %183
    %185 = vrot.lane.b32.xlu0 %v167, 104
    %v186 = vpop.permute.xlu0 %185
    %187 = vrot.lane.b32.xlu0 %v172, 104
    %v188 = vpop.permute.xlu0 %187
    %189 = vrot.lane.b32.xlu0 %v167, 96
    %v190 = vpop.permute.xlu0 %189
    %191 = vrot.lane.b32.xlu0 %v172, 96
    %v192 = vpop.permute.xlu0 %191
    %193 = vrot.lane.b32.xlu0 %v178, 96
    %v194 = vpop.permute.xlu0 %193
    %195 = vrot.lane.b32.xlu0 %v180, 96
    %v196 = vpop.permute.xlu0 %195
    %197 = vrot.lane.b32.xlu0 %v182, 96
    %v198 = vpop.permute.xlu0 %197
    %199 = vrot.lane.b32.xlu0 %v184, 96
    %v200 = vpop.permute.xlu0 %199
    %201 = vrot.lane.b32.xlu0 %v186, 96
    %v202 = vpop.permute.xlu0 %201
    %203 = vrot.lane.b32.xlu0 %v188, 96
    %v204 = vpop.permute.xlu0 %203
    %vm205 = vcmask 64512
    %v206 = vsel %vm205, %v167, 0
    %v208 = vsel %vm205, %v172, 0
    %v210 = vsel %vm205, %v178, 0
    %v212 = vsel %vm205, %v180, 0
    %v214 = vsel %vm205, %v182, 0
    %v216 = vsel %vm205, %v184, 0
    %v218 = vsel %vm205, %v186, 0
    %v220 = vsel %vm205, %v188, 0
    %v222 = vsel %vm205, %v190, 0
    %v224 = vsel %vm205, %v192, 0
    %v226 = vsel %vm205, %v194, 0
    %v228 = vsel %vm205, %v196, 0
    %v230 = vsel %vm205, %v198, 0
    %v232 = vsel %vm205, %v200, 0
    %v234 = vsel %vm205, %v202, 0
    %v236 = vsel %vm205, %v204, 0
    %238 = vmatprep.subr.mxu0 0.0
    %239 = vmatpush1.xpose.msra.mxu0 %v222
    %240 = vmatprep.subr.mxu0 0.0
    %241 = vmatpush1.xpose.msra.mxu0 %v224
    %242 = vmatprep.subr.mxu0 0.0
    %243 = vmatpush1.xpose.msra.mxu0 %v226
    %244 = vmatprep.subr.mxu0 0.0
    %245 = vmatpush1.xpose.msra.mxu0 %v228
    %246 = vmatprep.subr.mxu0 0.0
    %247 = vmatpush1.xpose.msra.mxu0 %v230
    %248 = vmatprep.subr.mxu0 0.0
    %249 = vmatpush1.xpose.msra.mxu0 %v232
    %250 = vmatprep.subr.mxu0 0.0
    %251 = vmatpush1.xpose.msra.mxu0 %v234
    %252 = vmatprep.subr.mxu0 0.0
    %253 = vmatpush1.xpose.msra.mxu0 %v236
    %254 = vmatprep.subr.mxu0 0.0
    %255 = vmatpush1.xpose.msra.mxu0 0.0
    %256 = vmatprep.subr.mxu0 0.0
    %257 = vmatpush1.xpose.msra.mxu0 0.0
    %258 = vmatprep.subr.mxu0 0.0
    %259 = vmatpush1.xpose.msra.mxu0 0.0
    %260 = vmatprep.subr.mxu0 0.0
    %261 = vmatpush1.xpose.msra.mxu0 0.0
    %262 = vmatprep.subr.mxu0 0.0
    %263 = vmatpush1.xpose.msra.mxu0 0.0
    %264 = vmatprep.subr.mxu0 0.0
    %265 = vmatpush1.xpose.msra.mxu0 0.0
    %266 = vmatprep.subr.mxu0 0.0
    %267 = vmatpush1.xpose.msra.mxu0 0.0
    %268 = vmatprep.subr.mxu0 0.0
    %269 = vmatpush1.xpose.msra.mxu0 0.0
    %270 = vmatprep.subr.mxu0 0.0
    %271 = vmatpush1.xpose.msra.mxu0 0.0
    %272 = vmatprep.subr.mxu0 0.0
    %273 = vmatpush1.xpose.msra.mxu0 0.0
    %274 = vmatprep.subr.mxu0 0.0
    %275 = vmatpush1.xpose.msra.mxu0 0.0
    %276 = vmatprep.subr.mxu0 0.0
    %277 = vmatpush1.xpose.msra.mxu0 0.0
    %278 = vmatprep.subr.mxu0 0.0
    %279 = vmatpush1.xpose.msra.mxu0 0.0
    %280 = vmatprep.subr.mxu0 0.0
    %281 = vmatpush1.xpose.msra.mxu0 0.0
    %282 = vmatprep.subr.mxu0 0.0
    %283 = vmatpush1.xpose.msra.mxu0 0.0
    %284 = vmatprep.subr.mxu0 0.0
    %285 = vmatpush1.xpose.msra.mxu0 0.0
    %286 = vmatprep.subr.mxu0 0.0
    %287 = vmatpush1.xpose.msra.mxu0 0.0
    %288 = vmatprep.subr.mxu0 0.0
    %289 = vmatpush1.xpose.msra.mxu0 0.0
    %290 = vmatprep.subr.mxu0 0.0
    %291 = vmatpush1.xpose.msra.mxu0 0.0
    %292 = vmatprep.subr.mxu0 0.0
    %293 = vmatpush1.xpose.msra.mxu0 0.0
    %294 = vmatprep.subr.mxu0 0.0
    %295 = vmatpush1.xpose.msra.mxu0 0.0
    %296 = vmatprep.subr.mxu0 0.0
    %297 = vmatpush1.xpose.msra.mxu0 0.0
    %298 = vmatprep.subr.mxu0 0.0
    %299 = vmatpush1.xpose.msra.mxu0 0.0
    %300 = vmatprep.subr.mxu0 0.0
    %301 = vmatpush1.xpose.msra.mxu0 0.0
    %302 = vmatprep.mubr.f32.mxu0 0.0
    %303 = vmatmul.mubr.f32.gmra.mrb[0].mxu0 %v206
    %v304 = vpop.f32.mrb[0].mxu0
    %v305 = vadd.f32 0.0, %v304
    %v306 = vpop.f32.mrb[0].mxu0
    %307 = vmatprep.mubr.f32.mxu0 0.0
    %308 = vmatmul.mubr.f32.gmra.mrb[0].mxu0 %v208
    %v309 = vpop.f32.mrb[0].mxu0
    %v310 = vadd.f32 0.0, %v309
    %v311 = vpop.f32.mrb[0].mxu0
    %312 = vmatprep.mubr.f32.mxu0 0.0
    %313 = vmatmul.mubr.f32.gmra.mrb[0].mxu0 %v210
    %v314 = vpop.f32.mrb[0].mxu0
    %v315 = vadd.f32 0.0, %v314
    %v316 = vpop.f32.mrb[0].mxu0
    %317 = vmatprep.mubr.f32.mxu0 0.0
    %318 = vmatmul.mubr.f32.gmra.mrb[0].mxu0 %v212
    %v319 = vpop.f32.mrb[0].mxu0
    %v320 = vadd.f32 0.0, %v319
    %v321 = vpop.f32.mrb[0].mxu0
    %322 = vmatprep.mubr.f32.mxu0 0.0
    %323 = vmatmul.mubr.f32.gmra.mrb[0].mxu0 %v214
    %v324 = vpop.f32.mrb[0].mxu0
    %v325 = vadd.f32 0.0, %v324
    %v326 = vpop.f32.mrb[0].mxu0
    %327 = vmatprep.mubr.f32.mxu0 0.0
    %328 = vmatmul.mubr.f32.gmra.mrb[0].mxu0 %v216
    %v329 = vpop.f32.mrb[0].mxu0
    %v330 = vadd.f32 0.0, %v329
    %v331 = vpop.f32.mrb[0].mxu0
    %332 = vmatprep.mubr.f32.mxu0 0.0
    %333 = vmatmul.mubr.f32.gmra.mrb[0].mxu0 %v218
    %v334 = vpop.f32.mrb[0].mxu0
    %v335 = vadd.f32 0.0, %v334
    %v336 = vpop.f32.mrb[0].mxu0
    %337 = vmatprep.mubr.f32.mxu0 0.0
    %338 = vmatmul.mubr.f32.gmra.mrb[0].mxu0 %v220
    %v339 = vpop.f32.mrb[0].mxu0
    %v340 = vadd.f32 0.0, %v339
    %v341 = vpop.f32.mrb[0].mxu0
    %342 = vdwg.mxu0
    %v343 = vlaneseq
    %v344 = vshrl.u32 %v343, 7
    %v345 = vadd.s32 %v344, 8
    %v346 = vadd.s32 %v344, 16
    %v347 = vadd.s32 %v344, 24
    %v348 = vadd.s32 %v344, 32
    %v349 = vadd.s32 %v344, 40
    %v350 = vadd.s32 %v344, 48
    %v351 = vadd.s32 %v344, 56
    %v352 = vlaneseq
    %v353 = vand.u32 %v352, 127
    %v354 = vshra.s32 %v344, 3
    %v355 = vshra.s32 %v345, 3
    %v356 = vshra.s32 %v346, 3
    %v357 = vshra.s32 %v347, 3
    %v358 = vshra.s32 %v348, 3
    %v359 = vshra.s32 %v349, 3
    %v360 = vshra.s32 %v350, 3
    %v361 = vshra.s32 %v351, 3
    %v362 = vshra.s32 %v353, 3
    %vm363 = vcmp.eq.s32.totalorder %v354, %v362
    %vm364 = vcmp.eq.s32.totalorder %v355, %v362
    %vm365 = vcmp.eq.s32.totalorder %v356, %v362
    %vm366 = vcmp.eq.s32.totalorder %v357, %v362
    %vm367 = vcmp.eq.s32.totalorder %v358, %v362
    %vm368 = vcmp.eq.s32.totalorder %v359, %v362
    %vm369 = vcmp.eq.s32.totalorder %v360, %v362
    %vm370 = vcmp.eq.s32.totalorder %v361, %v362
    %v371 = vsel %vm363, %v305, -1e+30
    %v372 = vsel %vm364, %v310, -1e+30
    %v373 = vsel %vm365, %v315, -1e+30
    %v374 = vsel %vm366, %v320, -1e+30
    %v375 = vsel %vm367, %v325, -1e+30
    %v376 = vsel %vm368, %v330, -1e+30
    %v377 = vsel %vm369, %v335, -1e+30
    %v378 = vsel %vm370, %v340, -1e+30
    %vm379 = vcmask 523264
    %v380 = vsel %vm379, %v371, -inf
    %381 = vmax.xlane.f32.xlu0 %v380
    %v382 = vpop.xlane.xlu0 %381
    %v383 = vsel %vm379, %v372, -inf
    %384 = vmax.xlane.f32.xlu0 %v383
    %v385 = vpop.xlane.xlu0 %384
    %v386 = vsel %vm379, %v373, -inf
    %387 = vmax.xlane.f32.xlu0 %v386
    %v388 = vpop.xlane.xlu0 %387
    %v389 = vsel %vm379, %v374, -inf
    %390 = vmax.xlane.f32.xlu0 %v389
    %v391 = vpop.xlane.xlu0 %390
    %v392 = vsel %vm379, %v375, -inf
    %393 = vmax.xlane.f32.xlu0 %v392
    %v394 = vpop.xlane.xlu0 %393
    %v395 = vsel %vm379, %v376, -inf
    %396 = vmax.xlane.f32.xlu0 %v395
    %v397 = vpop.xlane.xlu0 %396
    %v398 = vsel %vm379, %v377, -inf
    %399 = vmax.xlane.f32.xlu0 %v398
    %v400 = vpop.xlane.xlu0 %399
    %v401 = vsel %vm379, %v378, -inf
    %402 = vmax.xlane.f32.xlu0 %v401
    %v403 = vpop.xlane.xlu0 %402
    %v404 = vsub.f32 %v371, %v382
    %v405 = vsub.f32 %v372, %v385
    %v406 = vsub.f32 %v373, %v388
    %v407 = vsub.f32 %v374, %v391
    %v408 = vsub.f32 %v375, %v394
    %v409 = vsub.f32 %v376, %v397
    %v410 = vsub.f32 %v377, %v400
    %v411 = vsub.f32 %v378, %v403
    %v412 = vmul.f32 %v404, 1.442695
    %v413 = vpow.pop %v412
    %v414 = vmul.f32 %v405, 1.442695
    %v415 = vpow.pop %v414
    %v416 = vmul.f32 %v406, 1.442695
    %v417 = vpow.pop %v416
    %v418 = vmul.f32 %v407, 1.442695
    %v419 = vpow.pop %v418
    %v420 = vmul.f32 %v408, 1.442695
    %v421 = vpow.pop %v420
    %v422 = vmul.f32 %v409, 1.442695
    %v423 = vpow.pop %v422
    %v424 = vmul.f32 %v410, 1.442695
    %v425 = vpow.pop %v424
    %v426 = vmul.f32 %v411, 1.442695
    %v427 = vpow.pop %v426
    %v428 = vsel %vm379, %v413, 0.0
    %429 = vadd.xlane.f32.xlu0 %v428
    %v430 = vpop.xlane.xlu0 %429
    %v431 = vsel %vm379, %v415, 0.0
    %432 = vadd.xlane.f32.xlu0 %v431
    %v433 = vpop.xlane.xlu0 %432
    %v434 = vsel %vm379, %v417, 0.0
    %435 = vadd.xlane.f32.xlu0 %v434
    %v436 = vpop.xlane.xlu0 %435
    %v437 = vsel %vm379, %v419, 0.0
    %438 = vadd.xlane.f32.xlu0 %v437
    %v439 = vpop.xlane.xlu0 %438
    %v440 = vsel %vm379, %v421, 0.0
    %441 = vadd.xlane.f32.xlu0 %v440
    %v442 = vpop.xlane.xlu0 %441
    %v443 = vsel %vm379, %v423, 0.0
    %444 = vadd.xlane.f32.xlu0 %v443
    %v445 = vpop.xlane.xlu0 %444
    %v446 = vsel %vm379, %v425, 0.0
    %447 = vadd.xlane.f32.xlu0 %v446
    %v448 = vpop.xlane.xlu0 %447
    %v449 = vsel %vm379, %v427, 0.0
    %450 = vadd.xlane.f32.xlu0 %v449
    %v451 = vpop.xlane.xlu0 %450
    %v452 = vrcp.pop %v430
    %v453 = vrcp.pop %v433
    %v454 = vrcp.pop %v436
    %v455 = vrcp.pop %v439
    %v456 = vrcp.pop %v442
    %v457 = vrcp.pop %v445
    %v458 = vrcp.pop %v448
    %v459 = vrcp.pop %v451
    %v460 = vmul.f32 %v413, %v452
    %v461 = vmul.f32 %v415, %v453
    %v462 = vmul.f32 %v417, %v454
    %v463 = vmul.f32 %v419, %v455
    %v464 = vmul.f32 %v421, %v456
    %v465 = vmul.f32 %v423, %v457
    %v466 = vmul.f32 %v425, %v458
    %v467 = vmul.f32 %v427, %v459
    %468 = vrot.lane.b32.xlu0 %v167, 64
    %v469 = vpop.permute.xlu0 %468
    %470 = vrot.lane.b32.xlu0 %v172, 64
    %v471 = vpop.permute.xlu0 %470
    %472 = vrot.lane.b32.xlu0 %v178, 64
    %v473 = vpop.permute.xlu0 %472
    %474 = vrot.lane.b32.xlu0 %v180, 64
    %v475 = vpop.permute.xlu0 %474
    %476 = vrot.lane.b32.xlu0 %v182, 64
    %v477 = vpop.permute.xlu0 %476
    %478 = vrot.lane.b32.xlu0 %v184, 64
    %v479 = vpop.permute.xlu0 %478
    %480 = vrot.lane.b32.xlu0 %v186, 64
    %v481 = vpop.permute.xlu0 %480
    %482 = vrot.lane.b32.xlu0 %v188, 64
    %v483 = vpop.permute.xlu0 %482
    %v493 = vsel %vm379, %v460, 0
    %v496 = vsel %vm379, %v461, 0
    %v499 = vsel %vm379, %v462, 0
    %v502 = vsel %vm379, %v463, 0
    %v505 = vsel %vm379, %v464, 0
    %v508 = vsel %vm379, %v465, 0
    %v511 = vsel %vm379, %v466, 0
    %v514 = vsel %vm379, %v467, 0
    %516 = vmatprep.subr.mxu0 0.0
    %517 = vmatpush1.msra.mxu0 %v469
    %518 = vmatprep.subr.mxu0 0.0
    %519 = vmatpush1.msra.mxu0 %v471
    %520 = vmatprep.subr.mxu0 0.0
    %521 = vmatpush1.msra.mxu0 %v473
    %522 = vmatprep.subr.mxu0 0.0
    %523 = vmatpush1.msra.mxu0 %v475
    %524 = vmatprep.subr.mxu0 0.0
    %525 = vmatpush1.msra.mxu0 %v477
    %526 = vmatprep.subr.mxu0 0.0
    %527 = vmatpush1.msra.mxu0 %v479
    %528 = vmatprep.subr.mxu0 0.0
    %529 = vmatpush1.msra.mxu0 %v481
    %530 = vmatprep.subr.mxu0 0.0
    %531 = vmatpush1.msra.mxu0 %v483
    %532 = vmatprep.subr.mxu0 0.0
    %533 = vmatpush1.msra.mxu0 0.0
    %534 = vmatprep.subr.mxu0 0.0
    %535 = vmatpush1.msra.mxu0 0.0
    %536 = vmatprep.subr.mxu0 0.0
    %537 = vmatpush1.msra.mxu0 0.0
    %538 = vmatprep.subr.mxu0 0.0
    %539 = vmatpush1.msra.mxu0 0.0
    %540 = vmatprep.subr.mxu0 0.0
    %541 = vmatpush1.msra.mxu0 0.0
    %542 = vmatprep.subr.mxu0 0.0
    %543 = vmatpush1.msra.mxu0 0.0
    %544 = vmatprep.subr.mxu0 0.0
    %545 = vmatpush1.msra.mxu0 0.0
    %546 = vmatprep.subr.mxu0 0.0
    %547 = vmatpush1.msra.mxu0 0.0
    %548 = vmatprep.subr.mxu0 0.0
    %549 = vmatpush1.msra.mxu0 0.0
    %550 = vmatprep.subr.mxu0 0.0
    %551 = vmatpush1.msra.mxu0 0.0
    %552 = vmatprep.subr.mxu0 0.0
    %553 = vmatpush1.msra.mxu0 0.0
    %554 = vmatprep.subr.mxu0 0.0
    %555 = vmatpush1.msra.mxu0 0.0
    %556 = vmatprep.subr.mxu0 0.0
    %557 = vmatpush1.msra.mxu0 0.0
    %558 = vmatprep.subr.mxu0 0.0
    %559 = vmatpush1.msra.mxu0 0.0
    %560 = vmatprep.subr.mxu0 0.0
    %561 = vmatpush1.msra.mxu0 0.0
    %562 = vmatprep.subr.mxu0 0.0
    %563 = vmatpush1.msra.mxu0 0.0
    %564 = vmatprep.subr.mxu0 0.0
    %565 = vmatpush1.msra.mxu0 0.0
    %566 = vmatprep.subr.mxu0 0.0
    %567 = vmatpush1.msra.mxu0 0.0
    %568 = vmatprep.subr.mxu0 0.0
    %569 = vmatpush1.msra.mxu0 0.0
    %570 = vmatprep.subr.mxu0 0.0
    %571 = vmatpush1.msra.mxu0 0.0
    %572 = vmatprep.subr.mxu0 0.0
    %573 = vmatpush1.msra.mxu0 0.0
    %574 = vmatprep.subr.mxu0 0.0
    %575 = vmatpush1.msra.mxu0 0.0
    %576 = vmatprep.subr.mxu0 0.0
    %577 = vmatpush1.msra.mxu0 0.0
    %578 = vmatprep.subr.mxu0 0.0
    %579 = vmatpush1.msra.mxu0 0.0
    %580 = vmatprep.mubr.f32.mxu0 0.0
    %581 = vmatmul.mubr.f32.gmra.mrb[0].mxu0 %v493
    %v582 = vpop.f32.mrb[0].mxu0
    %v583 = vadd.f32 0.0, %v582
    %v584 = vpop.f32.mrb[0].mxu0
    %585 = vmatprep.mubr.f32.mxu0 0.0
    %586 = vmatmul.mubr.f32.gmra.mrb[0].mxu0 %v496
    %v587 = vpop.f32.mrb[0].mxu0
    %v588 = vadd.f32 0.0, %v587
    %v589 = vpop.f32.mrb[0].mxu0
    %590 = vmatprep.mubr.f32.mxu0 0.0
    %591 = vmatmul.mubr.f32.gmra.mrb[0].mxu0 %v499
    %v592 = vpop.f32.mrb[0].mxu0
    %v593 = vadd.f32 0.0, %v592
    %v594 = vpop.f32.mrb[0].mxu0
    %595 = vmatprep.mubr.f32.mxu0 0.0
    %596 = vmatmul.mubr.f32.gmra.mrb[0].mxu0 %v502
    %v597 = vpop.f32.mrb[0].mxu0
    %v598 = vadd.f32 0.0, %v597
    %v599 = vpop.f32.mrb[0].mxu0
    %600 = vmatprep.mubr.f32.mxu0 0.0
    %601 = vmatmul.mubr.f32.gmra.mrb[0].mxu0 %v505
    %v602 = vpop.f32.mrb[0].mxu0
    %v603 = vadd.f32 0.0, %v602
    %v604 = vpop.f32.mrb[0].mxu0
    %605 = vmatprep.mubr.f32.mxu0 0.0
    %606 = vmatmul.mubr.f32.gmra.mrb[0].mxu0 %v508
    %v607 = vpop.f32.mrb[0].mxu0
    %v608 = vadd.f32 0.0, %v607
    %v609 = vpop.f32.mrb[0].mxu0
    %610 = vmatprep.mubr.f32.mxu0 0.0
    %611 = vmatmul.mubr.f32.gmra.mrb[0].mxu0 %v511
    %v612 = vpop.f32.mrb[0].mxu0
    %v613 = vadd.f32 0.0, %v612
    %v614 = vpop.f32.mrb[0].mxu0
    %615 = vmatprep.mubr.f32.mxu0 0.0
    %616 = vmatmul.mubr.f32.gmra.mrb[0].mxu0 %v514
    %v617 = vpop.f32.mrb[0].mxu0
    %v618 = vadd.f32 0.0, %v617
    %v619 = vpop.f32.mrb[0].mxu0
    %620 = vdwg.mxu0
    %623 = vrot.lane.b32.xlu0 %v593, 8
    %v624 = vpop.permute.xlu0 %623
    %625 = vrot.lane.b32.xlu0 %v598, 8
    %v626 = vpop.permute.xlu0 %625
    %631 = vrot.lane.b32.xlu0 %v603, 16
    %v632 = vpop.permute.xlu0 %631
    %633 = vrot.lane.b32.xlu0 %v608, 16
    %v634 = vpop.permute.xlu0 %633
    %639 = vrot.lane.b32.xlu0 %v613, 24
    %v640 = vpop.permute.xlu0 %639
    %641 = vrot.lane.b32.xlu0 %v618, 24
    %v642 = vpop.permute.xlu0 %641
    %v645 = vsel %vm205, %v583, %v624
    %v646 = vsel %vm205, %v588, %v626
    %vm647 = vcmask 130048
    %v648 = vsel %vm647, %v645, %v632
    %v649 = vsel %vm647, %v646, %v634
    %vm650 = vcmask 195584
    %v651 = vsel %vm650, %v648, %v640
    %v652 = vsel %vm650, %v649, %v642
    %v653 = vlaneseq
    %v654 = vshrl.u32 %v653, 7
    %v655 = vsub.s32 0, %v654
    %v656 = vrot.slane %v43, %v655
    %661 = vrot.lane.b32.xlu0 %v86, 32
    %v662 = vpop.permute.xlu0 %661
    %663 = vrot.lane.b32.xlu0 %v87, 32
    %v664 = vpop.permute.xlu0 %663
    %665 = vrot.lane.b32.xlu0 %v88, 32
    %v666 = vpop.permute.xlu0 %665
    %667 = vrot.lane.b32.xlu0 %v89, 32
    %v668 = vpop.permute.xlu0 %667
    %v674 = vsel %vm46, %v651, 0
    %v677 = vsel %vm46, %v652, 0
    %679 = vmatprep.subr.mxu0 0.0
    %680 = vmatpush1.msra.mxu0 %v662
    %681 = vmatprep.subr.mxu0 0.0
    %682 = vmatpush1.msra.mxu0 %v664
    %683 = vmatprep.subr.mxu0 0.0
    %684 = vmatpush1.msra.mxu0 %v666
    %685 = vmatprep.subr.mxu0 0.0
    %686 = vmatpush1.msra.mxu0 %v668
    %687 = vmatprep.subr.mxu0 0.0
    %688 = vmatpush1.msra.mxu0 0.0
    %689 = vmatprep.subr.mxu0 0.0
    %690 = vmatpush1.msra.mxu0 0.0
    %691 = vmatprep.subr.mxu0 0.0
    %692 = vmatpush1.msra.mxu0 0.0
    %693 = vmatprep.subr.mxu0 0.0
    %694 = vmatpush1.msra.mxu0 0.0
    %695 = vmatprep.subr.mxu0 0.0
    %696 = vmatpush1.msra.mxu0 0.0
    %697 = vmatprep.subr.mxu0 0.0
    %698 = vmatpush1.msra.mxu0 0.0
    %699 = vmatprep.subr.mxu0 0.0
    %700 = vmatpush1.msra.mxu0 0.0
    %701 = vmatprep.subr.mxu0 0.0
    %702 = vmatpush1.msra.mxu0 0.0
    %703 = vmatprep.subr.mxu0 0.0
    %704 = vmatpush1.msra.mxu0 0.0
    %705 = vmatprep.subr.mxu0 0.0
    %706 = vmatpush1.msra.mxu0 0.0
    %707 = vmatprep.subr.mxu0 0.0
    %708 = vmatpush1.msra.mxu0 0.0
    %709 = vmatprep.subr.mxu0 0.0
    %710 = vmatpush1.msra.mxu0 0.0
    %711 = vmatprep.subr.mxu0 0.0
    %712 = vmatpush1.msra.mxu0 0.0
    %713 = vmatprep.subr.mxu0 0.0
    %714 = vmatpush1.msra.mxu0 0.0
    %715 = vmatprep.subr.mxu0 0.0
    %716 = vmatpush1.msra.mxu0 0.0
    %717 = vmatprep.subr.mxu0 0.0
    %718 = vmatpush1.msra.mxu0 0.0
    %719 = vmatprep.subr.mxu0 0.0
    %720 = vmatpush1.msra.mxu0 0.0
    %721 = vmatprep.subr.mxu0 0.0
    %722 = vmatpush1.msra.mxu0 0.0
    %723 = vmatprep.subr.mxu0 0.0
    %724 = vmatpush1.msra.mxu0 0.0
    %725 = vmatprep.subr.mxu0 0.0
    %726 = vmatpush1.msra.mxu0 0.0
    %727 = vmatprep.subr.mxu0 0.0
    %728 = vmatpush1.msra.mxu0 0.0
    %729 = vmatprep.subr.mxu0 0.0
    %730 = vmatpush1.msra.mxu0 0.0
    %731 = vmatprep.subr.mxu0 0.0
    %732 = vmatpush1.msra.mxu0 0.0
    %733 = vmatprep.subr.mxu0 0.0
    %734 = vmatpush1.msra.mxu0 0.0
    %735 = vmatprep.subr.mxu0 0.0
    %736 = vmatpush1.msra.mxu0 0.0
    %737 = vmatprep.subr.mxu0 0.0
    %738 = vmatpush1.msra.mxu0 0.0
    %739 = vmatprep.subr.mxu0 0.0
    %740 = vmatpush1.msra.mxu0 0.0
    %741 = vmatprep.subr.mxu0 0.0
    %742 = vmatpush1.msra.mxu0 0.0
    %743 = vmatprep.mubr.f32.mxu0 0.0
    %744 = vmatmul.mubr.f32.gmra.mrb[0].mxu0 %v674
    %v745 = vpop.f32.mrb[0].mxu0
    %v746 = vadd.f32 %v656, %v745
    %v747 = vpop.f32.mrb[0].mxu0
    %748 = vmatprep.mubr.f32.mxu0 0.0
    %749 = vmatmul.mubr.f32.gmra.mrb[0].mxu0 %v677
    %v750 = vpop.f32.mrb[0].mxu0
    %v751 = vadd.f32 %v656, %v750
    %v752 = vpop.f32.mrb[0].mxu0
    %753 = vdwg.mxu0
    %v754 = vadd.f32 %v40, %v746
    %v755 = vadd.f32 %v41, %v751
    %v756 = vsel %vm46, %v754, 0.0
    %757 = vadd.xlane.f32.xlu0 %v756
    %v758 = vpop.xlane.xlu0 %757
    %v759 = vsel %vm46, %v755, 0.0
    %760 = vadd.xlane.f32.xlu0 %v759
    %v761 = vpop.xlane.xlu0 %760
    %v762 = vmul.f32 %v758, %v53
    %v763 = vmul.f32 %v761, %v53
    %v764 = vsub.f32 %v754, %v762
    %v765 = vsub.f32 %v755, %v763
    %v766 = vmul.f32 %v764, %v764
    %v767 = vmul.f32 %v765, %v765
    %v768 = vsel %vm46, %v766, 0.0
    %769 = vadd.xlane.f32.xlu0 %v768
    %v770 = vpop.xlane.xlu0 %769
    %v771 = vsel %vm46, %v767, 0.0
    %772 = vadd.xlane.f32.xlu0 %v771
    %v773 = vpop.xlane.xlu0 %772
    %v774 = vmul.f32 %v770, %v53
    %v775 = vmul.f32 %v773, %v53
    %v776 = vadd.f32 %v774, 1e-05
    %v777 = vadd.f32 %v775, 1e-05
    %v778 = vrsqrt.pop %v776
    %v779 = vrsqrt.pop %v777
    %v780 = vmul.f32 %v764, %v778
    %v781 = vmul.f32 %v765, %v779
    %782 = vrot.lane.b32.xlu0 %v77, 64
    %v783 = vpop.permute.xlu0 %782
    %v785 = vmul.f32 %v780, %v783
    %v786 = vmul.f32 %v781, %v783
    %787 = vrot.lane.b32.xlu0 %v77, 32
    %v788 = vpop.permute.xlu0 %787
    %v790 = vadd.f32 %v785, %v788
    %v791 = vadd.f32 %v786, %v788
    %v792 = vld [vmem:[#allocation5 + $0x20] sm:$0xff]
    %v793 = vld [vmem:[#allocation5 + $0x28] sm:$0xff]
    %v794 = vld [vmem:[#allocation5 + $0x30] sm:$0xff]
    %v795 = vld [vmem:[#allocation5 + $0x38] sm:$0xff]
    %v796 = vlaneseq
    %v797 = vshrl.u32 %v796, 7
    %v798 = vsub.s32 0, %v797
    %v799 = vrot.slane %v44, %v798
    %v801 = vsel %vm46, %v790, 0
    %v804 = vsel %vm46, %v791, 0
    %806 = vmatprep.subr.mxu0 0.0
    %807 = vmatpush1.msra.mxu0 %v792
    %808 = vmatprep.subr.mxu0 0.0
    %809 = vmatpush1.msra.mxu0 %v793
    %810 = vmatprep.subr.mxu0 0.0
    %811 = vmatpush1.msra.mxu0 %v794
    %812 = vmatprep.subr.mxu0 0.0
    %813 = vmatpush1.msra.mxu0 %v795
    %814 = vmatprep.subr.mxu0 0.0
    %815 = vmatpush1.msra.mxu0 0.0
    %816 = vmatprep.subr.mxu0 0.0
    %817 = vmatpush1.msra.mxu0 0.0
    %818 = vmatprep.subr.mxu0 0.0
    %819 = vmatpush1.msra.mxu0 0.0
    %820 = vmatprep.subr.mxu0 0.0
    %821 = vmatpush1.msra.mxu0 0.0
    %822 = vmatprep.subr.mxu0 0.0
    %823 = vmatpush1.msra.mxu0 0.0
    %824 = vmatprep.subr.mxu0 0.0
    %825 = vmatpush1.msra.mxu0 0.0
    %826 = vmatprep.subr.mxu0 0.0
    %827 = vmatpush1.msra.mxu0 0.0
    %828 = vmatprep.subr.mxu0 0.0
    %829 = vmatpush1.msra.mxu0 0.0
    %830 = vmatprep.subr.mxu0 0.0
    %831 = vmatpush1.msra.mxu0 0.0
    %832 = vmatprep.subr.mxu0 0.0
    %833 = vmatpush1.msra.mxu0 0.0
    %834 = vmatprep.subr.mxu0 0.0
    %835 = vmatpush1.msra.mxu0 0.0
    %836 = vmatprep.subr.mxu0 0.0
    %837 = vmatpush1.msra.mxu0 0.0
    %838 = vmatprep.subr.mxu0 0.0
    %839 = vmatpush1.msra.mxu0 0.0
    %840 = vmatprep.subr.mxu0 0.0
    %841 = vmatpush1.msra.mxu0 0.0
    %842 = vmatprep.subr.mxu0 0.0
    %843 = vmatpush1.msra.mxu0 0.0
    %844 = vmatprep.subr.mxu0 0.0
    %845 = vmatpush1.msra.mxu0 0.0
    %846 = vmatprep.subr.mxu0 0.0
    %847 = vmatpush1.msra.mxu0 0.0
    %848 = vmatprep.subr.mxu0 0.0
    %849 = vmatpush1.msra.mxu0 0.0
    %850 = vmatprep.subr.mxu0 0.0
    %851 = vmatpush1.msra.mxu0 0.0
    %852 = vmatprep.subr.mxu0 0.0
    %853 = vmatpush1.msra.mxu0 0.0
    %854 = vmatprep.subr.mxu0 0.0
    %855 = vmatpush1.msra.mxu0 0.0
    %856 = vmatprep.subr.mxu0 0.0
    %857 = vmatpush1.msra.mxu0 0.0
    %858 = vmatprep.subr.mxu0 0.0
    %859 = vmatpush1.msra.mxu0 0.0
    %860 = vmatprep.subr.mxu0 0.0
    %861 = vmatpush1.msra.mxu0 0.0
    %862 = vmatprep.subr.mxu0 0.0
    %863 = vmatpush1.msra.mxu0 0.0
    %864 = vmatprep.subr.mxu0 0.0
    %865 = vmatpush1.msra.mxu0 0.0
    %866 = vmatprep.subr.mxu0 0.0
    %867 = vmatpush1.msra.mxu0 0.0
    %868 = vmatprep.subr.mxu0 0.0
    %869 = vmatpush1.msra.mxu0 0.0
    %870 = vmatprep.mubr.f32.mxu0 0.0
    %871 = vmatmul.mubr.f32.gmra.mrb[0].mxu0 %v801
    %v872 = vpop.f32.mrb[0].mxu0
    %v873 = vadd.f32 %v799, %v872
    %v874 = vpop.f32.mrb[0].mxu0
    %875 = vmatprep.mubr.f32.mxu0 0.0
    %876 = vmatmul.mubr.f32.gmra.mrb[0].mxu0 %v804
    %v877 = vpop.f32.mrb[0].mxu0
    %v878 = vadd.f32 %v799, %v877
    %v879 = vpop.f32.mrb[0].mxu0
    %880 = vdwg.mxu0
    %v881 = vmul.f32 %v873, 0.5
    %v882 = vmul.f32 %v878, 0.5
    %v883 = vmul.f32 %v873, 0.70710677
    %v884 = vmul.f32 %v878, 0.70710677
    %v885 = vand.u32 2147483647, %v883
    %v886 = vand.u32 2147483647, %v884
    %v887 = vmul.f32 %v885, 0.3275911
    %v888 = vmul.f32 %v886, 0.3275911
    %v889 = vadd.f32 %v887, 1.0
    %v890 = vadd.f32 %v888, 1.0
    %v891 = vrcp.pop %v889
    %v892 = vmul.f32 1.0, %v891
    %v893 = vrcp.pop %v890
    %v894 = vmul.f32 1.0, %v893
    %v895 = vmul.f32 %v892, 1.0614054
    %v896 = vmul.f32 %v894, 1.0614054
    %v897 = vadd.f32 %v895, -1.4531521
    %v898 = vadd.f32 %v896, -1.4531521
    %v899 = vmul.f32 %v897, %v892
    %v900 = vmul.f32 %v898, %v894
    %v901 = vadd.f32 %v899, 1.4214138
    %v902 = vadd.f32 %v900, 1.4214138
    %v903 = vmul.f32 %v901, %v892
    %v904 = vmul.f32 %v902, %v894
    %v905 = vadd.f32 %v903, -0.28449672
    %v906 = vadd.f32 %v904, -0.28449672
    %v907 = vmul.f32 %v905, %v892
    %v908 = vmul.f32 %v906, %v894
    %v909 = vadd.f32 %v907, 0.2548296
    %v910 = vadd.f32 %v908, 0.2548296
    %v911 = vmul.f32 %v909, %v892
    %v912 = vmul.f32 %v910, %v894
    %v913 = vsub.f32 0.0, %v885
    %v914 = vsub.f32 0.0, %v886
    %v915 = vmul.f32 %v913, %v885
    %v916 = vmul.f32 %v914, %v886
    %v917 = vmul.f32 %v915, 1.442695
    %v918 = vpow.pop %v917
    %v919 = vmul.f32 %v916, 1.442695
    %v920 = vpow.pop %v919
    %v921 = vmul.f32 %v911, %v918
    %v922 = vmul.f32 %v912, %v920
    %v923 = vsub.f32 1.0, %v921
    %v924 = vsub.f32 1.0, %v922
    %vm925 = vcmp.ge.f32.partialorder %v883, 0.0
    %vm926 = vcmp.ge.f32.partialorder %v884, 0.0
    %v927 = vsub.f32 0.0, %v923
    %v928 = vsub.f32 0.0, %v924
    %v929 = vsel %vm925, %v923, %v927
    %v930 = vsel %vm926, %v924, %v928
    %v931 = vadd.f32 %v929, 1.0
    %v932 = vadd.f32 %v930, 1.0
    %v933 = vmul.f32 %v881, %v931
    %v934 = vmul.f32 %v882, %v932
    %v935 = vld [vmem:[#allocation5 + $0x40] sm:$0xff]
    %v936 = vld [vmem:[#allocation5 + $0x48] sm:$0xff]
    %v937 = vld [vmem:[#allocation5 + $0x50] sm:$0xff]
    %v938 = vld [vmem:[#allocation5 + $0x58] sm:$0xff]
    %v939 = vld [vmem:[#allocation5 + $0x60] sm:$0xff]
    %v940 = vld [vmem:[#allocation5 + $0x68] sm:$0xff]
    %v941 = vld [vmem:[#allocation5 + $0x70] sm:$0xff]
    %v942 = vld [vmem:[#allocation5 + $0x78] sm:$0xff]
    %v943 = vld [vmem:[#allocation5 + $0x80] sm:$0xff]
    %v944 = vld [vmem:[#allocation5 + $0x88] sm:$0xff]
    %v945 = vld [vmem:[#allocation5 + $0x90] sm:$0xff]
    %v946 = vld [vmem:[#allocation5 + $0x98] sm:$0xff]
    %v947 = vld [vmem:[#allocation5 + $0xa0] sm:$0xff]
    %v948 = vld [vmem:[#allocation5 + $0xa8] sm:$0xff]
    %v949 = vld [vmem:[#allocation5 + $0xb0] sm:$0xff]
    %v950 = vld [vmem:[#allocation5 + $0xb8] sm:$0xff]
    %952 = vrot.lane.b32.xlu0 %v656, 96
    %v953 = vpop.permute.xlu0 %952
    %955 = vmatprep.subr.mxu0 0.0
    %956 = vmatpush1.msra.mxu0 %v935
    %957 = vmatprep.subr.mxu0 0.0
    %958 = vmatpush1.msra.mxu0 %v936
    %959 = vmatprep.subr.mxu0 0.0
    %960 = vmatpush1.msra.mxu0 %v937
    %961 = vmatprep.subr.mxu0 0.0
    %962 = vmatpush1.msra.mxu0 %v938
    %963 = vmatprep.subr.mxu0 0.0
    %964 = vmatpush1.msra.mxu0 %v939
    %965 = vmatprep.subr.mxu0 0.0
    %966 = vmatpush1.msra.mxu0 %v940
    %967 = vmatprep.subr.mxu0 0.0
    %968 = vmatpush1.msra.mxu0 %v941
    %969 = vmatprep.subr.mxu0 0.0
    %970 = vmatpush1.msra.mxu0 %v942
    %971 = vmatprep.subr.mxu0 0.0
    %972 = vmatpush1.msra.mxu0 %v943
    %973 = vmatprep.subr.mxu0 0.0
    %974 = vmatpush1.msra.mxu0 %v944
    %975 = vmatprep.subr.mxu0 0.0
    %976 = vmatpush1.msra.mxu0 %v945
    %977 = vmatprep.subr.mxu0 0.0
    %978 = vmatpush1.msra.mxu0 %v946
    %979 = vmatprep.subr.mxu0 0.0
    %980 = vmatpush1.msra.mxu0 %v947
    %981 = vmatprep.subr.mxu0 0.0
    %982 = vmatpush1.msra.mxu0 %v948
    %983 = vmatprep.subr.mxu0 0.0
    %984 = vmatpush1.msra.mxu0 %v949
    %985 = vmatprep.subr.mxu0 0.0
    %986 = vmatpush1.msra.mxu0 %v950
    %987 = vmatprep.subr.mxu0 0.0
    %988 = vmatpush1.msra.mxu0 0.0
    %989 = vmatprep.subr.mxu0 0.0
    %990 = vmatpush1.msra.mxu0 0.0
    %991 = vmatprep.subr.mxu0 0.0
    %992 = vmatpush1.msra.mxu0 0.0
    %993 = vmatprep.subr.mxu0 0.0
    %994 = vmatpush1.msra.mxu0 0.0
    %995 = vmatprep.subr.mxu0 0.0
    %996 = vmatpush1.msra.mxu0 0.0
    %997 = vmatprep.subr.mxu0 0.0
    %998 = vmatpush1.msra.mxu0 0.0
    %999 = vmatprep.subr.mxu0 0.0
    %1000 = vmatpush1.msra.mxu0 0.0
    %1001 = vmatprep.subr.mxu0 0.0
    %1002 = vmatpush1.msra.mxu0 0.0
    %1003 = vmatprep.subr.mxu0 0.0
    %1004 = vmatpush1.msra.mxu0 0.0
    %1005 = vmatprep.subr.mxu0 0.0
    %1006 = vmatpush1.msra.mxu0 0.0
    %1007 = vmatprep.subr.mxu0 0.0
    %1008 = vmatpush1.msra.mxu0 0.0
    %1009 = vmatprep.subr.mxu0 0.0
    %1010 = vmatpush1.msra.mxu0 0.0
    %1011 = vmatprep.subr.mxu0 0.0
    %1012 = vmatpush1.msra.mxu0 0.0
    %1013 = vmatprep.subr.mxu0 0.0
    %1014 = vmatpush1.msra.mxu0 0.0
    %1015 = vmatprep.subr.mxu0 0.0
    %1016 = vmatpush1.msra.mxu0 0.0
    %1017 = vmatprep.subr.mxu0 0.0
    %1018 = vmatpush1.msra.mxu0 0.0
    %1019 = vmatprep.mubr.f32.mxu0 0.0
    %1020 = vmatmul.mubr.f32.gmra.mrb[0].mxu0 %v933
    %v1021 = vpop.f32.mrb[0].mxu0
    %v1022 = vadd.f32 %v953, %v1021
    %v1023 = vpop.f32.mrb[0].mxu0
    %1024 = vmatprep.mubr.f32.mxu0 0.0
    %1025 = vmatmul.mubr.f32.gmra.mrb[0].mxu0 %v934
    %v1026 = vpop.f32.mrb[0].mxu0
    %v1027 = vadd.f32 %v953, %v1026
    %v1028 = vpop.f32.mrb[0].mxu0
    %1029 = vdwg.mxu0
    %v1030 = vadd.f32 %v754, %v1022
    %v1031 = vadd.f32 %v755, %v1027
    %1032 = vst.msk [vmem:[#allocation7] sm:$0xff] %vm46, %v1030
    %1033 = vst.msk [vmem:[#allocation7 + $0x8] sm:$0xff] %vm46, %v1031
    // Predicated region
    $region18: #{tpu_custom_call.1} parent=1 // pred_check
      _
    $region19: #{tpu_custom_call.1} parent=1 // pred_check_branch
      %1035 = sbr.rel (0) target = $region21
    $region20: #{tpu_custom_call.1} parent=1 // pred_region
      %s1037 = ssub.s32 256, 256
      %1038 = vsyncadd [#allocation4], %s1037
      %s1039 = sshll.u32 [#allocation7], 4
      %s1040 = int_to_ptr.vmem [resolvable:$true] %s1039
      %1045 = dma.vmem_to_hbm [thread:$0]  %s1040, 256, %s2, [#allocation4], 128, 128, 8
    $region21: #{tpu_custom_call.1} parent=1 // pred_fallthru
      _
    // Predicated region
    $region22: #{tpu_custom_call.1} parent=1 // pred_check
      _
    $region23: #{tpu_custom_call.1} parent=1 // pred_check_branch
      %1047 = sbr.rel (0) target = $region25
    $region24: #{tpu_custom_call.1} parent=1 // pred_region
      %1048 = dma.done [#allocation4], 256
    $region25: #{tpu_custom_call.1} parent=1 // pred_fallthru
      _
    %1049 = vsyncpa [#allocation3], 1
    %1050 = vsyncpa [#allocation6], 1
    %1051 = vsyncpa [#allocation4], 1

</llo_original>
